<compile_context>
chip_gen: v7x
topology: tpu7x:2x2x1
jax: 0.10.0
libtpu: 0.0.40
codegen_flags: <defaults>
</compile_context>

<pallas_src>
import numpy as np
import jax
import jax.numpy as jnp
from jax import lax
from jax.experimental import pallas as pl
from jax.experimental.pallas import tpu as pltpu


# --------------------------------------------------------------------------- #
# In-kernel helpers
# --------------------------------------------------------------------------- #
def _layer_norm(x, w, b, eps=1e-5):
    mu = jnp.mean(x, axis=-1, keepdims=True)
    var = jnp.mean((x - mu) ** 2, axis=-1, keepdims=True)
    return (x - mu) * lax.rsqrt(var + eps) * w + b


def _chip_defaults():
    """(vmem_limit_bytes, max_seqs_per_block) gated by the local chip generation."""
    vmem = 64 * 1024 * 1024
    try:
        info = pltpu.get_tpu_info()
        v = getattr(info, "vmem_capacity_bytes", None)
        if v:
            vmem = int(v)
    except Exception:
        pass
    if vmem >= 100 * 1024 * 1024:          # v5e / v6e / v4 / v5p: 128 MiB physical
        return 96 * 1024 * 1024, 16
    return 48 * 1024 * 1024, 8             # v7x: 64 MiB physical per TC


# --------------------------------------------------------------------------- #
# Fused CLIP transformer-encoder kernel.
# Grid = (batch_block  [parallel], layer  [arbitrary]).
# Per-layer weights are streamed (BlockSpec indexed by the layer id); the
# residual stream lives in a VMEM scratch (Nb*S, D) across the layer axis.
# Pool index comes in via scalar prefetch (SMEM).
# Used for BOTH the visual encoder (causal=False, ln_pre) and the text encoder
# (causal=True, no ln_pre).
# --------------------------------------------------------------------------- #
def make_encoder_kernel(num_layers, num_heads, seq_len, seqs_per_block,
                        causal, use_ln_pre):
    S, Nb, H = seq_len, seqs_per_block, num_heads

    def kernel(pool_ref,               # scalar prefetch: (N_pad,) int32 pooled idx
               x_ref, pos_ref, mask_ref,
               lnpre_w, lnpre_b,
               ln1_w, ln1_b, w_qkv, b_qkv, w_o, b_o,
               ln2_w, ln2_b, fc1_w, fc1_b, fc2_w, fc2_b,
               lnf_w, lnf_b, out_proj,
               o_ref, x_sc, qkv_sc, attn_sc, pooled_sc):
        blk = pl.program_id(0)
        layer = pl.program_id(1)
        D = x_sc.shape[-1]
        Dh = D // H

        # ---- first layer step: pos-embed (+ ln_pre) into the resident stream ----
        @pl.when(layer == 0)
        def _init():
            pos = pos_ref[...]
            if Nb > 1:
                pos = jnp.concatenate([pos] * Nb, axis=0)
            x0 = x_ref[...].astype(jnp.float32) + pos
            if use_ln_pre:
                x0 = _layer_norm(x0, lnpre_w[...], lnpre_b[...])
            x_sc[...] = x0

        x = x_sc[...]                                    # (Nb*S, D) f32 residual

        # ------------------ multi-head self-attention (pre-LN) ------------------
        # Attention scale is pre-folded into the Q columns of w_qkv/b_qkv.
        xn = _layer_norm(x, ln1_w[0], ln1_b[0])
        qkv = jnp.dot(xn.astype(jnp.bfloat16), w_qkv[0],
                      preferred_element_type=jnp.float32) + b_qkv[0]   # (Nb*S, 3D)
        qkv = qkv.astype(jnp.bfloat16)
        for b in range(Nb):                              # cheap staging stores
            qkv_sc[b] = qkv[b * S:(b + 1) * S, :]

        mask = mask_ref[...] if causal else None         # additive (S, S) mask

        def attend(b, carry):
            qkv_b = qkv_sc[b]                            # (S, 3D) bf16
            heads = []
            for h in range(H):
                c0 = h * Dh
                q_h = qkv_b[:, c0:c0 + Dh]
                k_h = qkv_b[:, D + c0:D + c0 + Dh]
                v_h = qkv_b[:, 2 * D + c0:2 * D + c0 + Dh]
                s = lax.dot_general(q_h, k_h, (((1,), (1,)), ((), ())),
                                    preferred_element_type=jnp.float32)  # (S, S)
                if causal:
                    s = s + mask
                s = s - jnp.max(s, axis=-1, keepdims=True)
                p = jnp.exp(s)                                            # f32
                inv = pl.reciprocal(jnp.sum(p, axis=-1, keepdims=True),
                                    approx=True)
                pv = jnp.dot(p.astype(jnp.bfloat16), v_h,
                             preferred_element_type=jnp.float32)          # (S, Dh)
                heads.append((pv * inv).astype(jnp.bfloat16))
            attn_sc[b] = jnp.concatenate(heads, axis=-1)                  # (S, D)
            return carry

        lax.fori_loop(0, Nb, attend, 0)

        attn = jnp.concatenate([attn_sc[b] for b in range(Nb)], axis=0)   # bf16
        attn = jnp.dot(attn, w_o[0],
                       preferred_element_type=jnp.float32) + b_o[0]
        x = x + attn

        # ------------------------ MLP with QuickGELU ---------------------------
        xn = _layer_norm(x, ln2_w[0], ln2_b[0])
        hdn = jnp.dot(xn.astype(jnp.bfloat16), fc1_w[0],
                      preferred_element_type=jnp.float32) + fc1_b[0]
        # GELU math in f32 (safe on v5e); result narrowed to bf16 for fc2.
        hdn = (hdn * jax.nn.sigmoid(1.702 * hdn)).astype(jnp.bfloat16)
        hdn = jnp.dot(hdn, fc2_w[0],
                      preferred_element_type=jnp.float32) + fc2_b[0]
        x = x + hdn
        x_sc[...] = x

        # ---- last layer step: pooled-token select, final LN, projection, L2 ----
        # (LN is row-wise, so select-then-LN == LN-then-select.)
        @pl.when(layer == num_layers - 1)
        def _final():
            for b in range(Nb):
                idx = pool_ref[blk * Nb + b]
                pooled_sc[pl.ds(b, 1), :] = x_sc[pl.ds(b * S + idx, 1), :]
            pooled = _layer_norm(pooled_sc[...], lnf_w[...], lnf_b[...])
            feats = jnp.dot(pooled.astype(jnp.bfloat16), out_proj[...],
                            preferred_element_type=jnp.float32)
            # L2-normalize here so the logits kernel is a pure scaled GEMM.
            # (tiny floor only guards zero-padded batch rows)
            feats = feats * lax.rsqrt(
                jnp.maximum(jnp.sum(feats * feats, axis=-1, keepdims=True), 1e-12))
            o_ref[...] = feats

    return kernel


_ENC_WEIGHT_ORDER = ("lnpre_w", "lnpre_b",
                     "ln1_w", "ln1_b", "w_qkv", "b_qkv", "w_o", "b_o",
                     "ln2_w", "ln2_b", "fc1_w", "fc1_b", "fc2_w", "fc2_b",
                     "lnf_w", "lnf_b", "out_proj")
_PER_LAYER = frozenset({"ln1_w", "ln1_b", "w_qkv", "b_qkv", "w_o", "b_o",
                        "ln2_w", "ln2_b", "fc1_w", "fc1_b", "fc2_w", "fc2_b"})


def run_encoder(x, pos, pool_idx, params, *, num_heads, causal, use_ln_pre,
                max_seqs_per_block=None, vmem_limit=None):
    """x: (N, S, D), pool_idx: (N,) int32 → L2-normalized (N, P) float32."""
    N, S, D = x.shape
    P = params["out_proj"].shape[-1]
    L = params["ln1_w"].shape[0]

    lim, ms = _chip_defaults()
    vmem_limit = vmem_limit or lim
    max_seqs_per_block = max_seqs_per_block or ms

    # Nb must be a multiple of 8 whenever the batch is tiled (keeps both the
    # (Nb*S, D) activation block and the (Nb, P) output block sublane-legal for
    # any S); a single full block is used when N is small.
    nb = max(8, (max_seqs_per_block // 8) * 8)
    Nb = N if nb >= N else nb
    N_pad = pl.cdiv(N, Nb) * Nb
    if N_pad != N:
        x = jnp.concatenate([x, jnp.zeros((N_pad - N, S, D), x.dtype)], axis=0)
        pool_idx = jnp.concatenate(
            [pool_idx, jnp.zeros((N_pad - N,), pool_idx.dtype)], axis=0)
    num_blocks = N_pad // Nb
    # Activations streamed in bf16 (only added to the f32 pos-embed at layer 0).
    x_flat = x.reshape(N_pad * S, D).astype(jnp.bfloat16)
    pos = pos.astype(jnp.float32)

    # Fold the attention scale into the Q columns of w_qkv / b_qkv.
    scale = float(D // num_heads) ** -0.5
    weights = []
    for name in _ENC_WEIGHT_ORDER:
        w = params[name]
        if name in ("w_qkv", "b_qkv"):
            w = jnp.concatenate([w[..., :D] * scale, w[..., D:]], axis=-1)
        weights.append(w)

    # Additive causal mask precomputed once on the host.
    if causal:
        r = jnp.arange(S)
        mask = jnp.where(r[None, :] <= r[:, None], 0.0, -1e9).astype(jnp.float32)
    else:
        mask = jnp.zeros((1, 1), jnp.float32)     # unused dummy

    def const_spec(a):
        nd = a.ndim
        return pl.BlockSpec(a.shape, lambda i, l, *_: (0,) * nd)

    def layer_spec(a):
        nd = a.ndim
        return pl.BlockSpec((1,) + a.shape[1:],
                            lambda i, l, *_: (l,) + (0,) * (nd - 1))

    in_specs = [pl.BlockSpec((Nb * S, D), lambda i, l, *_: (i, 0)),
                const_spec(pos), const_spec(mask)]
    for name, w in zip(_ENC_WEIGHT_ORDER, weights):
        in_specs.append(layer_spec(w) if name in _PER_LAYER else const_spec(w))
    out_specs = pl.BlockSpec((Nb, P), lambda i, l, *_: (i, 0))

    kernel = make_encoder_kernel(L, num_heads, S, Nb, causal, use_ln_pre)
    out = pl.pallas_call(
        kernel,
        out_shape=jax.ShapeDtypeStruct((N_pad, P), jnp.float32),
        grid_spec=pltpu.PrefetchScalarGridSpec(
            num_scalar_prefetch=1,
            grid=(num_blocks, L),
            in_specs=in_specs,
            out_specs=out_specs,
            scratch_shapes=[
                pltpu.VMEM((Nb * S, D), jnp.float32),        # residual stream
                pltpu.VMEM((Nb, S, 3 * D), jnp.bfloat16),    # fused qkv staging
                pltpu.VMEM((Nb, S, D), jnp.bfloat16),        # per-seq attn out
                pltpu.VMEM((Nb, D), jnp.float32),            # pooled rows
            ]),
        compiler_params=pltpu.CompilerParams(
            dimension_semantics=("parallel", "arbitrary"),
            vmem_limit_bytes=vmem_limit),
    )(pool_idx, x_flat, pos, mask, *weights)
    return out[:N]


# --------------------------------------------------------------------------- #
# Patch-embedding matmul kernel (the patchify Conv2d as an unfolded GEMM),
# tiled over the row (patch) dimension; emits bf16 (consumed in bf16 anyway).
# --------------------------------------------------------------------------- #
def _matmul_kernel(a_ref, b_ref, o_ref):
    o_ref[...] = jnp.dot(a_ref[...], b_ref[...],
                         preferred_element_type=jnp.float32).astype(o_ref.dtype)


def patch_embed(patches, w, *, block_m=512):
    M, K = patches.shape
    N = w.shape[1]
    tm = min(block_m, M)
    M_pad = pl.cdiv(M, tm) * tm
    if M_pad != M:
        patches = jnp.concatenate(
            [patches, jnp.zeros((M_pad - M, K), patches.dtype)], axis=0)
    out = pl.pallas_call(
        _matmul_kernel,
        out_shape=jax.ShapeDtypeStruct((M_pad, N), jnp.bfloat16),
        grid=(M_pad // tm,),
        in_specs=[pl.BlockSpec((tm, K), lambda i: (i, 0)),
                  pl.BlockSpec((K, N), lambda i: (0, 0))],
        out_specs=pl.BlockSpec((tm, N), lambda i: (i, 0)),
        compiler_params=pltpu.CompilerParams(
            dimension_semantics=("parallel",)),
    )(patches, w)
    return out[:M]


# --------------------------------------------------------------------------- #
# Logits kernel: pure cosine-similarity GEMM (both feature sets arrive
# L2-normalized from the encoders, logit scale pre-applied to image features),
# tiled over the class axis so the output stays lane-dense for large C.
# --------------------------------------------------------------------------- #
def _logits_kernel(img_ref, txt_ref, o_ref):
    o_ref[...] = lax.dot_general(img_ref[...].astype(jnp.bfloat16),
                                 txt_ref[...].astype(jnp.bfloat16),
                                 (((1,), (1,)), ((), ())),
                                 preferred_element_type=jnp.float32)


def clip_logits(image_features, text_features, *, block_c=512):
    B, F = image_features.shape
    C = text_features.shape[0]
    tc = min(block_c, C)
    C_pad = pl.cdiv(C, tc) * tc
    if C_pad != C:
        text_features = jnp.concatenate(
            [text_features, jnp.zeros((C_pad - C, F), text_features.dtype)], axis=0)
    out = pl.pallas_call(
        _logits_kernel,
        out_shape=jax.ShapeDtypeStruct((B, C_pad), jnp.float32),
        grid=(C_pad // tc,),
        in_specs=[pl.BlockSpec((B, F), lambda j: (0, 0)),
                  pl.BlockSpec((tc, F), lambda j: (j, 0))],
        out_specs=pl.BlockSpec((B, tc), lambda j: (0, j)),
        compiler_params=pltpu.CompilerParams(
            dimension_semantics=("parallel",)),
    )(image_features, text_features)
    return out[:, :C]


# --------------------------------------------------------------------------- #
# CustomCLIP.forward
# --------------------------------------------------------------------------- #
def custom_clip_forward(image, params):
    # ----- image encoder (CLIP ViT) -----
    B, C, H, W = image.shape
    p = params["patch_size"]
    Dv = params["vis_width"]
    Hp, Wp = H // p, W // p
    patches = (image.reshape(B, C, Hp, p, Wp, p)
                    .transpose(0, 2, 4, 1, 3, 5)
                    .reshape(B * Hp * Wp, C * p * p)).astype(jnp.bfloat16)
    tok = patch_embed(patches, params["conv_w"]).reshape(B, Hp * Wp, Dv)
    cls = jnp.broadcast_to(params["class_embedding"][None, None, :],
                           (B, 1, Dv)).astype(jnp.bfloat16)
    xv = jnp.concatenate([cls, tok], axis=1)                    # (B, 1+Np, Dv) bf16
    pool_v = jnp.zeros((B,), jnp.int32)                         # pool class token
    image_features = run_encoder(xv, params["vis_pos"], pool_v, params["visual"],
                                 num_heads=params["vis_heads"], causal=False,
                                 use_ln_pre=True)               # L2-normalized

    # ----- prompt learner (class_token_position == 'end', generic ctx) -----
    n_cls = params["token_prefix"].shape[0]
    ctx = jnp.broadcast_to(params["ctx"][None], (n_cls,) + params["ctx"].shape)
    prompts = jnp.concatenate([params["token_prefix"], ctx, params["token_suffix"]],
                              axis=1)                            # (n_cls, S, D)

    # ----- text encoder -----
    eot_idx = jnp.argmax(params["tokenized_prompts"], axis=-1).astype(jnp.int32)
    text_features = run_encoder(prompts, params["text_pos"][: prompts.shape[1]],
                                eot_idx, params["text"],
                                num_heads=params["text_heads"], causal=True,
                                use_ln_pre=False)                # L2-normalized

    # ----- logits (exp(logit_scale) pre-applied to the image features) -----
    scaled_img = image_features * jnp.exp(params["logit_scale"])
    return clip_logits(scaled_img, text_features)


# --------------------------------------------------------------------------- #
# Deterministic synthetic parameters (matmul weights in bf16, lane-dense / fused
# QKV layouts; LayerNorm params and biases in f32).
# --------------------------------------------------------------------------- #
def init_params(key):
    n_cls, n_ctx, ctx_len = 4, 4, 16
    d_text = d_vis = feat_dim = 32
    heads, layers, patch = 4, 2, 8

    keys = iter(jax.random.split(key, 64))

    def nrm(shape, std, dtype=jnp.bfloat16):
        return (std * jax.random.normal(next(keys), shape)).astype(dtype)

    def enc_params(D, P, L):
        return dict(
            lnpre_w=jnp.ones((1, D), jnp.float32), lnpre_b=jnp.zeros((1, D), jnp.float32),
            ln1_w=jnp.ones((L, 1, D), jnp.float32), ln1_b=jnp.zeros((L, 1, D), jnp.float32),
            w_qkv=nrm((L, D, 3 * D), D ** -0.5),                    # fused [Wq|Wk|Wv]
            b_qkv=jnp.zeros((L, 1, 3 * D), jnp.float32),
            w_o=nrm((L, D, D), D ** -0.5),
            b_o=jnp.zeros((L, 1, D), jnp.float32),
            ln2_w=jnp.ones((L, 1, D), jnp.float32), ln2_b=jnp.zeros((L, 1, D), jnp.float32),
            fc1_w=nrm((L, D, 4 * D), D ** -0.5),
            fc1_b=jnp.zeros((L, 1, 4 * D), jnp.float32),
            fc2_w=nrm((L, 4 * D, D), (4 * D) ** -0.5),
            fc2_b=jnp.zeros((L, 1, D), jnp.float32),
            lnf_w=jnp.ones((1, D), jnp.float32), lnf_b=jnp.zeros((1, D), jnp.float32),
            out_proj=nrm((D, P), D ** -0.5),
        )

    # synthetic tokenized prompts: [SOS, X*n_ctx, name-tokens, '.', EOT, pad...]
    SOS, EOT, XTOK, DOT = 49406, 49407, 343, 269
    name_lens = [1, 2, 3, 1]
    toks = np.zeros((n_cls, ctx_len), np.int32)
    for i, nl in enumerate(name_lens):
        seq = [SOS] + [XTOK] * n_ctx + list(range(1000, 1000 + nl)) + [DOT, EOT]
        toks[i, :len(seq)] = seq
    tokenized_prompts = jnp.asarray(toks)

    # frozen token embedding of the prompts (prefix = SOS slot, suffix = rest)
    embedding = nrm((n_cls, ctx_len, d_text), 0.02, jnp.float32)

    n_patches = (16 // patch) ** 2
    params = dict(
        patch_size=patch, vis_width=d_vis, vis_heads=heads, text_heads=heads,
        conv_w=nrm((3 * patch * patch, d_vis), (3 * patch * patch) ** -0.5),
        class_embedding=nrm((d_vis,), d_vis ** -0.5, jnp.float32),
        vis_pos=nrm((1 + n_patches, d_vis), 0.01, jnp.float32),
        visual=enc_params(d_vis, feat_dim, layers),
        ctx=nrm((n_ctx, d_text), 0.02, jnp.float32),
        token_prefix=embedding[:, :1, :],
        token_suffix=embedding[:, 1 + n_ctx:, :],
        tokenized_prompts=tokenized_prompts,
        text_pos=nrm((ctx_len, d_text), 0.01, jnp.float32),
        text=enc_params(d_text, feat_dim, layers),
        logit_scale=jnp.full((1, 1), np.log(1.0 / 0.07), jnp.float32),
    )
    return params


if __name__ == "__main__":
    key = jax.random.PRNGKey(0)
    kp, kimg = jax.random.split(key)
    params = init_params(kp)
    image = jax.random.normal(kimg, (2, 3, 16, 16), jnp.float32)   # NCHW, like PyTorch

    # NOTE: bf16 MXU inputs + approx reciprocal softmax give ~1e-3 relative
    # deviation vs. an fp32 PyTorch reference; acceptable for CLIP inference.
    logits = custom_clip_forward(image, params)
    logits = jax.block_until_ready(logits)

    assert logits.shape == (2, 4), logits.shape
    assert bool(jnp.all(jnp.isfinite(logits)))
    print("KERNEL_OK")
</pallas_src>

<mosaic_0001>
module attributes {stable_mosaic.version = 11 : i64} {
  func.func @_matmul_kernel(%arg0: i32, %arg1: memref<8x192xbf16, #tpu.memory_space<vmem>>, %arg2: memref<192x32xbf16, #tpu.memory_space<vmem>>, %arg3: memref<8x32xbf16, #tpu.memory_space<vmem>>) attributes {dimension_semantics = [#tpu.dimension_semantics<parallel>], iteration_bounds = array<i64: 1>, scalar_prefetch = 0 : i64, scratch_operands = 0 : i64, tpu.core_type = #tpu.core_type<tc>, window_params = [{transform_indices = @transform_0, window_bounds = array<i64: 8, 192>}, {pipeline_mode = #tpu.pipeline_mode<synchronous>, transform_indices = @transform_1, window_bounds = array<i64: 192, 32>}, {transform_indices = @transform_2, window_bounds = array<i64: 8, 32>}]} {
    %c0 = arith.constant 0 : index
    %c0_0 = arith.constant 0 : index
    %0 = vector.load %arg1[%c0, %c0_0] : memref<8x192xbf16, #tpu.memory_space<vmem>>, vector<8x192xbf16>
    %c0_1 = arith.constant 0 : index
    %c0_2 = arith.constant 0 : index
    %1 = vector.load %arg2[%c0_1, %c0_2] : memref<192x32xbf16, #tpu.memory_space<vmem>>, vector<192x32xbf16>
    %cst = arith.constant dense<0.000000e+00> : vector<8x32xf32>
    %2 = tpu.matmul %0, %1, %cst {dimension_numbers = #tpu.dot_dimension_numbers<[1], [0], [0], [1], [0, 0, 1, 1], [], []>} : vector<8x192xbf16>, vector<192x32xbf16>, vector<8x32xf32> -> vector<8x32xf32>
    %3 = arith.truncf %2 : vector<8x32xf32> to vector<8x32xbf16>
    %c0_3 = arith.constant 0 : index
    %c0_4 = arith.constant 0 : index
    %4 = vector.load %arg3[%c0_3, %c0_4] : memref<8x32xbf16, #tpu.memory_space<vmem>>, vector<8x32xbf16>
    tpu.vector_store %arg3[%c0_3, %c0_4], %3 {strides = array<i32>} : memref<8x32xbf16, #tpu.memory_space<vmem>>, vector<8x32xbf16>,
    return
  }
  func.func @transform_0(%arg0: i32) -> (i32, i32) {
    %c0_i32 = arith.constant 0 : i32
    %c0_i32_0 = arith.constant 0 : i32
    return %arg0, %c0_i32 : i32, i32
  }
  func.func @transform_1(%arg0: i32) -> (i32, i32) {
    %c0_i32 = arith.constant 0 : i32
    %c0_i32_0 = arith.constant 0 : i32
    %c0_i32_1 = arith.constant 0 : i32
    return %c0_i32, %c0_i32_0 : i32, i32
  }
  func.func @transform_2(%arg0: i32) -> (i32, i32) {
    %c0_i32 = arith.constant 0 : i32
    %c0_i32_0 = arith.constant 0 : i32
    return %arg0, %c0_i32 : i32, i32
  }
}

</mosaic_0001>

<llo_original>
// kernel: tpu_custom_call.1
$region0: #{tpu_custom_call.1}
  #allocation0 [shape = 'u32[]', space=smem, size = 0x4, offset = 0x4, fixed_abs, tag = 'smem constant byte address 0x4 - core index']
  #allocation1 [shape = 'u32[144,128]{1,0:T(1,128)}', space=vmem, size = 0x12000, scoped, tag = 'internal scratch']
  %s0 = inlined_call_operand.vmem [shape: bf16[8,192], index: 0, kind: input, shape index: {}]
  %s1 = inlined_call_operand.vmem [shape: bf16[192,32], index: 1, kind: input, shape index: {}]
  %s2 = inlined_call_operand.hbm [shape: bf16[8,32], index: 2, kind: output, shape index: {}]
  %s3 = sld [smem:[#allocation0]]
  $region18: #{tpu_custom_call.1} parent=0
    _
  %s5 = ssub.s32 1, %s3
  %s6 = scalar_select 0, %s5, %s3
  $region1: #{tpu_custom_call.1} parent=0
    #allocation2 [shape = 'u8[2048]{0}', space=vmem, size = 0x800, scoped, tag = 'output window, operand 0, single buffered']
    #allocation3 [shape = 's32[1]{0}', space=sflag, size = 0x4, scoped, tag = 'scoped memory for tpu_custom_call.1']
    %7 = vsyncpa [#allocation3], 0
    // Predicated region
    $region2: #{tpu_custom_call.1} parent=1 // pred_check
      _
    $region3: #{tpu_custom_call.1} parent=1 // pred_check_branch
      %9 = sbr.rel (0) target = $region5
    $region4: #{tpu_custom_call.1} parent=1 // pred_region
      _
    $region5: #{tpu_custom_call.1} parent=1 // pred_fallthru
      _
    // Predicated region
    $region6: #{tpu_custom_call.1} parent=1 // pred_check
      _
    $region7: #{tpu_custom_call.1} parent=1 // pred_check_branch
      %11 = sbr.rel (0) target = $region9
    $region8: #{tpu_custom_call.1} parent=1 // pred_region
      _
    $region9: #{tpu_custom_call.1} parent=1 // pred_fallthru
      _
    %v13 = vld [vmem:[%s0] sm:$0xff]
    %v14 = vld [vmem:[%s1] sm:$0xf]
    %v15 = vld [vmem:[%s1 + $0x4] sm:$0xf]
    %v16 = vld [vmem:[%s1 + $0x8] sm:$0xf]
    %v17 = vld [vmem:[%s1 + $0xc] sm:$0xf]
    %v18 = vld [vmem:[%s1 + $0x10] sm:$0xf]
    %v19 = vld [vmem:[%s1 + $0x14] sm:$0xf]
    %v20 = vld [vmem:[%s1 + $0x18] sm:$0xf]
    %v21 = vld [vmem:[%s1 + $0x1c] sm:$0xf]
    %v22 = vld [vmem:[%s1 + $0x20] sm:$0xf]
    %v23 = vld [vmem:[%s1 + $0x24] sm:$0xf]
    %v24 = vld [vmem:[%s1 + $0x28] sm:$0xf]
    %v25 = vld [vmem:[%s1 + $0x2c] sm:$0xf]
    %v26 = vld [vmem:[%s1 + $0x30] sm:$0xf]
    %v27 = vld [vmem:[%s1 + $0x34] sm:$0xf]
    %v28 = vld [vmem:[%s1 + $0x38] sm:$0xf]
    %v29 = vld [vmem:[%s1 + $0x3c] sm:$0xf]
    %v30 = vld [vmem:[%s1 + $0x40] sm:$0xf]
    %v31 = vld [vmem:[%s1 + $0x44] sm:$0xf]
    %v32 = vld [vmem:[%s1 + $0x48] sm:$0xf]
    %v33 = vld [vmem:[%s1 + $0x4c] sm:$0xf]
    %v34 = vld [vmem:[%s1 + $0x50] sm:$0xf]
    %v35 = vld [vmem:[%s1 + $0x54] sm:$0xf]
    %v36 = vld [vmem:[%s1 + $0x58] sm:$0xf]
    %v37 = vld [vmem:[%s1 + $0x5c] sm:$0xf]
    %v39 = vunpack.c.l.b16 %v13
    %v40 = vunpack.c.h.b16 %v13
    %v41 = vpack.c.b16 %v39, %v39
    %v42 = vpack.c.b16 %v40, %v40
    %v68 = vunpack.c.l.b16 %v14
    %v69 = vunpack.c.l.b16 %v15
    %v70 = vunpack.c.l.b16 %v16
    %v71 = vunpack.c.l.b16 %v17
    %v72 = vunpack.c.l.b16 %v18
    %v73 = vunpack.c.l.b16 %v19
    %v74 = vunpack.c.l.b16 %v20
    %v75 = vunpack.c.l.b16 %v21
    %v76 = vunpack.c.l.b16 %v22
    %v77 = vunpack.c.l.b16 %v23
    %v78 = vunpack.c.l.b16 %v24
    %v79 = vunpack.c.l.b16 %v25
    %v80 = vunpack.c.l.b16 %v26
    %v81 = vunpack.c.l.b16 %v27
    %v82 = vunpack.c.l.b16 %v28
    %v83 = vunpack.c.l.b16 %v29
    %v84 = vunpack.c.l.b16 %v30
    %v85 = vunpack.c.l.b16 %v31
    %v86 = vunpack.c.l.b16 %v32
    %v87 = vunpack.c.l.b16 %v33
    %v88 = vunpack.c.l.b16 %v34
    %v89 = vunpack.c.l.b16 %v35
    %v90 = vunpack.c.l.b16 %v36
    %v91 = vunpack.c.l.b16 %v37
    %v92 = vpack.c.b16 %v69, %v68
    %v93 = vpack.c.b16 %v71, %v70
    %v94 = vpack.c.b16 %v73, %v72
    %v95 = vpack.c.b16 %v75, %v74
    %v96 = vpack.c.b16 %v77, %v76
    %v97 = vpack.c.b16 %v79, %v78
    %v98 = vpack.c.b16 %v81, %v80
    %v99 = vpack.c.b16 %v83, %v82
    %v100 = vpack.c.b16 %v85, %v84
    %v101 = vpack.c.b16 %v87, %v86
    %v102 = vpack.c.b16 %v89, %v88
    %v103 = vpack.c.b16 %v91, %v90
    %vm116 = vcmask 523264
    %v118 = vsel %vm116, %v42, 0
    %120 = vmatprep.subr.bf16.mxu0 0
    %121 = vmatpush1.bf16.msra.mxu0 %v92
    %122 = vmatprep.subr.bf16.mxu0 0
    %123 = vmatpush1.bf16.msra.mxu0 %v93
    %124 = vmatprep.subr.bf16.mxu0 0
    %125 = vmatpush1.bf16.msra.mxu0 %v94
    %126 = vmatprep.subr.bf16.mxu0 0
    %127 = vmatpush1.bf16.msra.mxu0 %v95
    %128 = vmatprep.subr.bf16.mxu0 0
    %129 = vmatpush1.bf16.msra.mxu0 %v96
    %130 = vmatprep.subr.bf16.mxu0 0
    %131 = vmatpush1.bf16.msra.mxu0 %v97
    %132 = vmatprep.subr.bf16.mxu0 0
    %133 = vmatpush1.bf16.msra.mxu0 %v98
    %134 = vmatprep.subr.bf16.mxu0 0
    %135 = vmatpush1.bf16.msra.mxu0 %v99
    %136 = vmatprep.subr.bf16.mxu0 0
    %137 = vmatpush1.bf16.msra.mxu0 %v100
    %138 = vmatprep.subr.bf16.mxu0 0
    %139 = vmatpush1.bf16.msra.mxu0 %v101
    %140 = vmatprep.subr.bf16.mxu0 0
    %141 = vmatpush1.bf16.msra.mxu0 %v102
    %142 = vmatprep.subr.bf16.mxu0 0
    %143 = vmatpush1.bf16.msra.mxu0 %v103
    %144 = vmatprep.subr.bf16.mxu0 0
    %145 = vmatpush1.bf16.msra.mxu0 0
    %146 = vmatprep.subr.bf16.mxu0 0
    %147 = vmatpush1.bf16.msra.mxu0 0
    %148 = vmatprep.subr.bf16.mxu0 0
    %149 = vmatpush1.bf16.msra.mxu0 0
    %150 = vmatprep.subr.bf16.mxu0 0
    %151 = vmatpush1.bf16.msra.mxu0 0
    %152 = vmatprep.mubr.bf16.mxu0 %v118
    %153 = vmatmul.mubr.bf16.gmra.mrb[0].mxu0 %v41
    %v154 = vpop.f32.mrb[0].mxu0
    %v155 = vadd.f32 0.0, %v154
    %v156 = vpop.f32.mrb[0].mxu0
    %v157 = vpop.f32.mrb[0].mxu0
    %v158 = vpop.f32.mrb[0].mxu0
    %159 = vdwg.mxu0
    %v160 = vpack.c.bf16 %v155, %v155
    %vm161 = vcmask 257024
    %162 = vst.msk [vmem:[#allocation2] sm:$0xf] %vm161, %v160
    // Predicated region
    $region10: #{tpu_custom_call.1} parent=1 // pred_check
      _
    $region11: #{tpu_custom_call.1} parent=1 // pred_check_branch
      %164 = sbr.rel (0) target = $region13
    $region12: #{tpu_custom_call.1} parent=1 // pred_region
      %s166 = ssub.s32 64, 64
      %167 = vsyncadd [#allocation3], %s166
      %s169 = sshll.u32 [#allocation2], 4
      %s170 = int_to_ptr.vmem [resolvable:$true] %s169
      %172 = dma.vmem_to_hbm [thread:$0]  %s170, 64, %s2, [#allocation3]
    $region13: #{tpu_custom_call.1} parent=1 // pred_fallthru
      _
    // Predicated region
    $region14: #{tpu_custom_call.1} parent=1 // pred_check
      _
    $region15: #{tpu_custom_call.1} parent=1 // pred_check_branch
      %174 = sbr.rel (0) target = $region17
    $region16: #{tpu_custom_call.1} parent=1 // pred_region
      %175 = dma.done [#allocation3], 64
    $region17: #{tpu_custom_call.1} parent=1 // pred_fallthru
      _
    %176 = vsyncpa [#allocation3], 1

</llo_original>
